<compile_context>
chip_gen: v5e
topology: v5e:2x2
jax: 0.10.0
libtpu: 0.0.40
codegen_flags: <defaults>
</compile_context>

<pallas_src>
import jax
import jax.numpy as jnp
from jax.experimental import pallas as pl
from jax.experimental.pallas import tpu as pltpu

# ----- sizes (small, consistent with the module) ------------------------------
BATCH = 2
SRC_LEN = 8
ENC_HID = 32                     # cfg.hidden_size
DEC_HID = 32                     # cfg.hidden_size
ATTN_DIM = 16                    # cfg.attn_dim
ATTN_IN = 2 * ENC_HID + DEC_HID  # 96


# ============================ attention kernel ================================
def attention_kernel(h_ref, enc_ref, w_ref, out_ref):
    # Static, sublane-aligned views into the packed parameter block (free).
    w_h = w_ref[0:DEC_HID, :]                 # (DEC_HID, A)     rows  0..31
    w_e = w_ref[DEC_HID:ATTN_IN, :]           # (2*ENC_HID, A)   rows 32..95
    bias = w_ref[ATTN_IN:ATTN_IN + 1, :]      # (1, A)           row  96

    # Decoder-hidden half of the Linear layer: computed ONCE, broadcast over S.
    gh = jnp.dot(h_ref[...], w_h, preferred_element_type=jnp.float32) + bias  # (B, A)

    # Encoder half: ONE batched MXU matmul over all (b, s) rows (b-major layout).
    ge = jnp.dot(enc_ref[...], w_e, preferred_element_type=jnp.float32)       # (B*S, A)

    # energy[b, s, :] = tanh( enc[s, b] @ W_e + h[b] @ W_h + bias )
    # The (B*S, A) -> (B, S, A) reshape splits the sublane dim at the native
    # 8-sublane tile boundary, so it is layout-free.
    energy = jnp.tanh(ge.reshape(BATCH, SRC_LEN, ATTN_DIM) + gh[:, None, :])  # (B, S, A)
    scores = jnp.sum(energy, axis=-1)                                         # (B, S)

    # Exact softmax over the source-length (lane) axis.
    m = jnp.max(scores, axis=1, keepdims=True)
    e = jnp.exp(scores - m)
    out_ref[...] = e / jnp.sum(e, axis=1, keepdims=True)                      # (B, S)


def attention_forward(decoder_hidden, encoder_outputs, params):
    """Mirrors Attention.forward; returns (B, S) softmax attention weights."""
    # Host-side layout plumbing (mirrors the module's permute(1, 0, 2)):
    # present encoder outputs as a dense, b-major (B*S, 2*ENC_HID) slab so the
    # kernel can do a single batched matmul with no in-kernel gather/relayout.
    enc_bs = jnp.transpose(encoder_outputs, (1, 0, 2)).reshape(
        BATCH * SRC_LEN, 2 * ENC_HID)

    # Pack [W_h ; W_e ; bias] into one (ATTN_IN + 1, ATTN_DIM) block -> 3 input DMAs.
    # nn.Linear(attn_in, attn_dim): weight (attn_dim, attn_in), bias (attn_dim,).
    # Concat order cat([decoder_hidden, encoder_outputs], dim=2) => rows 0:DEC_HID
    # of attn_w.T multiply the decoder hidden, rows DEC_HID: the encoder outputs.
    w_packed = jnp.concatenate(
        [params["attn_w"].T, params["attn_b"][None, :]], axis=0)  # (97, ATTN_DIM)

    vmem = pl.BlockSpec(memory_space=pltpu.MemorySpace.VMEM)
    return pl.pallas_call(
        attention_kernel,
        out_shape=jax.ShapeDtypeStruct((BATCH, SRC_LEN), jnp.float32),
        in_specs=[vmem, vmem, vmem],       # whole arrays, VMEM resident, no grid
        out_specs=vmem,
    )(decoder_hidden, enc_bs, w_packed)


# =============================== reference ====================================
def ref_forward(decoder_hidden, encoder_outputs, params):
    """Direct transcription of the torch module (concat form)."""
    src_len = encoder_outputs.shape[0]
    rep = jnp.repeat(decoder_hidden[:, None, :], src_len, axis=1)   # (B, S, DEC_HID)
    enc = jnp.transpose(encoder_outputs, (1, 0, 2))                 # (B, S, 2*ENC_HID)
    cat = jnp.concatenate([rep, enc], axis=2)                       # (B, S, ATTN_IN)
    energy = jnp.tanh(cat @ params["attn_w"].T + params["attn_b"])  # (B, S, ATTN_DIM)
    attention = jnp.sum(energy, axis=2)                             # (B, S)
    return jax.nn.softmax(attention, axis=1)


# ================================ main ========================================
if __name__ == "__main__":
    key = jax.random.PRNGKey(0)
    k_h, k_e, k_w, k_b = jax.random.split(key, 4)

    decoder_hidden = jax.random.normal(k_h, (BATCH, DEC_HID), jnp.float32)
    encoder_outputs = jax.random.normal(k_e, (SRC_LEN, BATCH, 2 * ENC_HID), jnp.float32)
    params = {
        "attn_w": jax.random.normal(k_w, (ATTN_DIM, ATTN_IN), jnp.float32) * 0.1,
        "attn_b": jax.random.normal(k_b, (ATTN_DIM,), jnp.float32) * 0.1,
    }

    out = jax.jit(attention_forward)(decoder_hidden, encoder_outputs, params)
    out = jax.block_until_ready(out)

    assert out.shape == (BATCH, SRC_LEN), out.shape

    ref = ref_forward(decoder_hidden, encoder_outputs, params)
    err = float(jnp.max(jnp.abs(out - ref)))
    assert jnp.allclose(out, ref, atol=1e-4, rtol=1e-4), err
    assert jnp.allclose(jnp.sum(out, axis=1), 1.0, atol=1e-5)   # exact softmax rows

    print("KERNEL_OK")
</pallas_src>

<mosaic_0001>
module attributes {stable_mosaic.version = 11 : i64} {
  func.func @attention_kernel(%arg0: memref<2x32xf32, #tpu.memory_space<vmem>>, %arg1: memref<16x64xf32, #tpu.memory_space<vmem>>, %arg2: memref<97x16xf32, #tpu.memory_space<vmem>>, %arg3: memref<2x8xf32, #tpu.memory_space<vmem>>) attributes {dimension_semantics = [], scalar_prefetch = 0 : i64, scratch_operands = 0 : i64, tpu.core_type = #tpu.core_type<tc>} {
    %c0 = arith.constant 0 : index
    %c0_0 = arith.constant 0 : index
    %0 = vector.load %arg2[%c0, %c0_0] : memref<97x16xf32, #tpu.memory_space<vmem>>, vector<32x16xf32>
    %c32 = arith.constant 32 : index
    %c0_1 = arith.constant 0 : index
    %1 = vector.load %arg2[%c32, %c0_1] : memref<97x16xf32, #tpu.memory_space<vmem>>, vector<64x16xf32>
    %c96 = arith.constant 96 : index
    %c0_2 = arith.constant 0 : index
    %2 = vector.load %arg2[%c96, %c0_2] : memref<97x16xf32, #tpu.memory_space<vmem>>, vector<1x16xf32>
    %c0_3 = arith.constant 0 : index
    %c0_4 = arith.constant 0 : index
    %3 = vector.load %arg0[%c0_3, %c0_4] : memref<2x32xf32, #tpu.memory_space<vmem>>, vector<2x32xf32>
    %cst = arith.constant dense<0.000000e+00> : vector<2x16xf32>
    %4 = tpu.matmul %3, %0, %cst {dimension_numbers = #tpu.dot_dimension_numbers<[1], [0], [0], [1], [0, 0, 1, 1], [], []>} : vector<2x32xf32>, vector<32x16xf32>, vector<2x16xf32> -> vector<2x16xf32>
    %5 = vector.broadcast %2 : vector<1x16xf32> to vector<2x16xf32>
    %6 = arith.addf %4, %5 : vector<2x16xf32>
    %c0_5 = arith.constant 0 : index
    %c0_6 = arith.constant 0 : index
    %7 = vector.load %arg1[%c0_5, %c0_6] : memref<16x64xf32, #tpu.memory_space<vmem>>, vector<16x64xf32>
    %cst_7 = arith.constant dense<0.000000e+00> : vector<16x16xf32>
    %8 = tpu.matmul %7, %1, %cst_7 {dimension_numbers = #tpu.dot_dimension_numbers<[1], [0], [0], [1], [0, 0, 1, 1], [], []>} : vector<16x64xf32>, vector<64x16xf32>, vector<16x16xf32> -> vector<16x16xf32>
    %9 = vector.shape_cast %8 : vector<16x16xf32> to vector<2x8x16xf32>
    %10 = vector.shape_cast %6 : vector<2x16xf32> to vector<2x1x16xf32>
    %11 = vector.broadcast %10 : vector<2x1x16xf32> to vector<2x8x16xf32>
    %12 = arith.addf %9, %11 : vector<2x8x16xf32>
    %13 = math.tanh %12 : vector<2x8x16xf32>
    %cst_8 = arith.constant dense<0.000000e+00> : vector<2x8xf32>
    %14 = vector.multi_reduction <add>, %13, %cst_8 [2] : vector<2x8x16xf32> to vector<2x8xf32>
    %cst_9 = arith.constant dense<0xFF800000> : vector<2xf32>
    %15 = vector.multi_reduction <maximumf>, %14, %cst_9 [1] : vector<2x8xf32> to vector<2xf32>
    %16 = vector.shape_cast %15 : vector<2xf32> to vector<2x1xf32>
    %17 = vector.broadcast %16 : vector<2x1xf32> to vector<2x8xf32>
    %18 = arith.subf %14, %17 : vector<2x8xf32>
    %19 = math.exp %18 : vector<2x8xf32>
    %cst_10 = arith.constant dense<0.000000e+00> : vector<2xf32>
    %20 = vector.multi_reduction <add>, %19, %cst_10 [1] : vector<2x8xf32> to vector<2xf32>
    %21 = vector.shape_cast %20 : vector<2xf32> to vector<2x1xf32>
    %22 = vector.broadcast %21 : vector<2x1xf32> to vector<2x8xf32>
    %23 = arith.divf %19, %22 : vector<2x8xf32>
    %c0_11 = arith.constant 0 : index
    %c0_12 = arith.constant 0 : index
    %24 = vector.load %arg3[%c0_11, %c0_12] : memref<2x8xf32, #tpu.memory_space<vmem>>, vector<2x8xf32>
    tpu.vector_store %arg3[%c0_11, %c0_12], %23 {strides = array<i32>} : memref<2x8xf32, #tpu.memory_space<vmem>>, vector<2x8xf32>,
    return
  }
}

</mosaic_0001>

<llo_original>
// kernel: attention_forward.1
$region0: #{attention_forward.1}
  #allocation0 [shape = 'u32[]', space=smem, size = 0x4, offset = 0x4, fixed_abs, tag = 'smem constant byte address 0x4 - core index']
  #allocation1 [shape = 'u32[72,128]{1,0:T(1,128)}', space=vmem, size = 0x9000, scoped, tag = 'internal scratch']
  %s0 = inlined_call_operand.vmem [shape: f32[2,32], index: 0, kind: input, shape index: {}]
  %s1 = inlined_call_operand.vmem [shape: f32[16,64], index: 1, kind: input, shape index: {}]
  %s2 = inlined_call_operand.vmem [shape: f32[97,16], index: 2, kind: input, shape index: {}]
  %s3 = inlined_call_operand.hbm [shape: f32[2,8], index: 3, kind: output, shape index: {}]
  %s4 = sld [smem:[#allocation0]]
  $region22: #{attention_forward.1} parent=0
    _
  %s6 = ssub.s32 1, %s4
  %s7 = scalar_select 0, %s6, %s4
  $region1: #{attention_forward.1} parent=0
    #allocation2 [shape = 'u8[1024]{0}', space=vmem, size = 0x400, scoped, tag = 'output window, operand 0, single buffered']
    #allocation3 [shape = 's32[1]{0}', space=sflag, size = 0x4, scoped, tag = 'scoped memory for attention_forward.1']
    %8 = vsyncpa [#allocation3], 0
    // Predicated region
    $region2: #{attention_forward.1} parent=1 // pred_check
      _
    $region3: #{attention_forward.1} parent=1 // pred_check_branch
      %10 = sbr.rel (0) target = $region5
    $region4: #{attention_forward.1} parent=1 // pred_region
      _
    $region5: #{attention_forward.1} parent=1 // pred_fallthru
      _
    // Predicated region
    $region6: #{attention_forward.1} parent=1 // pred_check
      _
    $region7: #{attention_forward.1} parent=1 // pred_check_branch
      %12 = sbr.rel (0) target = $region9
    $region8: #{attention_forward.1} parent=1 // pred_region
      _
    $region9: #{attention_forward.1} parent=1 // pred_fallthru
      _
    // Predicated region
    $region10: #{attention_forward.1} parent=1 // pred_check
      _
    $region11: #{attention_forward.1} parent=1 // pred_check_branch
      %14 = sbr.rel (0) target = $region13
    $region12: #{attention_forward.1} parent=1 // pred_region
      _
    $region13: #{attention_forward.1} parent=1 // pred_fallthru
      _
    %v15 = vld [vmem:[%s2] sm:$0xff]
    %v16 = vld [vmem:[%s2 + $0x8] sm:$0xff]
    %v17 = vld [vmem:[%s2 + $0x10] sm:$0xff]
    %v18 = vld [vmem:[%s2 + $0x18] sm:$0xff]
    %v19 = vld [vmem:[%s2 + $0x20] sm:$0xff]
    %v20 = vld [vmem:[%s2 + $0x28] sm:$0xff]
    %v21 = vld [vmem:[%s2 + $0x30] sm:$0xff]
    %v22 = vld [vmem:[%s2 + $0x38] sm:$0xff]
    %v23 = vld [vmem:[%s2 + $0x40] sm:$0xff]
    %v24 = vld [vmem:[%s2 + $0x48] sm:$0xff]
    %v25 = vld [vmem:[%s2 + $0x50] sm:$0xff]
    %v26 = vld [vmem:[%s2 + $0x58] sm:$0xff]
    %v27 = vld [vmem:[%s2 + $0x60] sm:$0x1]
    %v28 = vld [vmem:[%s0] sm:$0x3]
    %v29 = vperm.slane %v27, 0
    %vm30 = vcmask 261120
    %v32 = vsel %vm30, %v28, 0
    %34 = vmatpush.msra.mxu0 0.0
    %35 = vmatpush.msra.mxu0 0.0
    %36 = vmatpush.msra.mxu0 0.0
    %37 = vmatpush.msra.mxu0 0.0
    %38 = vmatpush.msra.mxu0 0.0
    %39 = vmatpush.msra.mxu0 0.0
    %40 = vmatpush.msra.mxu0 0.0
    %41 = vmatpush.msra.mxu0 0.0
    %42 = vmatpush.msra.mxu0 0.0
    %43 = vmatpush.msra.mxu0 0.0
    %44 = vmatpush.msra.mxu0 0.0
    %45 = vmatpush.msra.mxu0 0.0
    %46 = vmatpush.msra.mxu0 %v18
    %47 = vmatpush.msra.mxu0 %v17
    %48 = vmatpush.msra.mxu0 %v16
    %49 = vmatpush.msra.mxu0 %v15
    %50 = vmatmul.f32.gmra.mxu0 %v32
    %v51 = vpop.f32.mrf.mxu0
    %v52 = vadd.f32 %v29, %v51
    %53 = vdwg.mxu0
    %v54 = vld [vmem:[%s1] sm:$0xff]
    %v55 = vld [vmem:[%s1 + $0x8] sm:$0xff]
    %vm56 = vcmask 523264
    %v58 = vsel %vm56, %v54, 0
    %v61 = vsel %vm56, %v55, 0
    %63 = vmatpush.msra.mxu0 0.0
    %64 = vmatpush.msra.mxu0 0.0
    %65 = vmatpush.msra.mxu0 0.0
    %66 = vmatpush.msra.mxu0 0.0
    %67 = vmatpush.msra.mxu0 0.0
    %68 = vmatpush.msra.mxu0 0.0
    %69 = vmatpush.msra.mxu0 0.0
    %70 = vmatpush.msra.mxu0 0.0
    %71 = vmatpush.msra.mxu0 %v26
    %72 = vmatpush.msra.mxu0 %v25
    %73 = vmatpush.msra.mxu0 %v24
    %74 = vmatpush.msra.mxu0 %v23
    %75 = vmatpush.msra.mxu0 %v22
    %76 = vmatpush.msra.mxu0 %v21
    %77 = vmatpush.msra.mxu0 %v20
    %78 = vmatpush.msra.mxu0 %v19
    %79 = vmatmul.f32.gmra.mxu0 %v58
    %v80 = vpop.f32.mrf.mxu0
    %v81 = vadd.f32 0.0, %v80
    %82 = vmatmul.f32.gmra.mxu0 %v61
    %v83 = vpop.f32.mrf.mxu0
    %v84 = vadd.f32 0.0, %v83
    %85 = vdwg.mxu0
    %v87 = vrot.slane %v52, 1
    %v88 = vperm.slane %v52, 0
    %v89 = vperm.slane %v87, 0
    %v92 = vadd.f32 %v81, %v88
    %v93 = vadd.f32 %v84, %v89
    %v94 = vtanh.pop %v92
    %v95 = vtanh.pop %v93
    %vm96 = vcmask 130048
    %v97 = vsel %vm96, %v94, 0.0
    %98 = vadd.xlane.f32.xlu0 %v97
    %v99 = vpop.xlane.xlu0 %98
    %v100 = vsel %vm96, %v95, 0.0
    %101 = vadd.xlane.f32.xlu0 %v100
    %v102 = vpop.xlane.xlu0 %101
    %v105 = vlaneseq
    %v106 = vand.u32 %v105, 127
    %v107 = vperm.slane %v99, %v106
    %v108 = vperm.slane %v102, %v106
    %vm109 = vcmask 1041409
    %v110 = vsel %vm109, %v108, %v107
    %vm112 = vcmask 58368
    %v113 = vsel %vm112, %v110, -inf
    %114 = vmax.xlane.f32.xlu0 %v113
    %v115 = vpop.xlane.xlu0 %114
    %v117 = vperm.slane %v115, 0
    %v118 = vperm.slane %v115, 1
    %v121 = vsub.f32 %v99, %v117
    %v122 = vsub.f32 %v102, %v118
    %v123 = vmul.f32 %v121, 1.442695
    %v124 = vpow.pop %v123
    %v125 = vmul.f32 %v122, 1.442695
    %v126 = vpow.pop %v125
    %129 = vset.pattern.permute.xlu0 0
    %130 = vperm.xlu0 %129, %v124
    %v131 = vpop.permute.xlu0 %130
    %132 = vset.pattern.permute.xlu0 0
    %133 = vperm.xlu0 %132, %v126
    %v134 = vpop.permute.xlu0 %133
    %v135 = vperm.slane %v131, %v106
    %v136 = vperm.slane %v134, %v106
    %v137 = vsel %vm109, %v136, %v135
    %v139 = vsel %vm112, %v137, 0.0
    %140 = vadd.xlane.f32.xlu0 %v139
    %v141 = vpop.xlane.xlu0 %140
    %v143 = vperm.slane %v141, 0
    %v144 = vperm.slane %v141, 1
    %v147 = vrcp.pop %v143
    %v148 = vmul.f32 %v143, %v147
    %v149 = vsub.f32 1.0, %v148
    %v150 = vmul.f32 %v147, %v149
    %v151 = vadd.f32 %v147, %v150
    %vm152 = vweird.f32 %v143
    %vm153 = vweird.f32 %v147
    %vm154 = vmor %vm152, %vm153
    %v155 = vsel %vm154, %v147, %v151
    %v156 = vand.u32 2147483647, %v143
    %vm157 = vcmp.eq.f32.partialorder %v156, 8.507059e+37
    %v158 = vand.u32 %v143, 2147483648
    %v159 = vor.u32 1.1754944e-38, %v158
    %v160 = vsel %vm157, %v159, %v155
    %v161 = vmul.f32 %v124, %v160
    %v162 = vrcp.pop %v144
    %v163 = vmul.f32 %v144, %v162
    %v164 = vsub.f32 1.0, %v163
    %v165 = vmul.f32 %v162, %v164
    %v166 = vadd.f32 %v162, %v165
    %vm167 = vweird.f32 %v144
    %vm168 = vweird.f32 %v162
    %vm169 = vmor %vm167, %vm168
    %v170 = vsel %vm169, %v162, %v166
    %v171 = vand.u32 2147483647, %v144
    %vm172 = vcmp.eq.f32.partialorder %v171, 8.507059e+37
    %v173 = vand.u32 %v144, 2147483648
    %v174 = vor.u32 1.1754944e-38, %v173
    %v175 = vsel %vm172, %v174, %v170
    %v176 = vmul.f32 %v126, %v175
    %179 = vset.pattern.permute.xlu0 0
    %180 = vperm.xlu0 %179, %v161
    %v181 = vpop.permute.xlu0 %180
    %182 = vset.pattern.permute.xlu0 0
    %183 = vperm.xlu0 %182, %v176
    %v184 = vpop.permute.xlu0 %183
    %v185 = vperm.slane %v181, %v106
    %v186 = vperm.slane %v184, %v106
    %v187 = vsel %vm109, %v186, %v185
    %189 = vst.msk [vmem:[#allocation2] sm:$0x3] %vm112, %v187
    // Predicated region
    $region14: #{attention_forward.1} parent=1 // pred_check
      _
    $region15: #{attention_forward.1} parent=1 // pred_check_branch
      %191 = sbr.rel (0) target = $region17
    $region16: #{attention_forward.1} parent=1 // pred_region
      %193 = vsyncadd [#allocation3], 0
      %s195 = sshll.u32 [#allocation2], 4
      %s196 = int_to_ptr.vmem [resolvable:$true] %s195
      %s197 = sshll.u32 %s3, 4
      %s198 = int_to_ptr.hbm [resolvable:$true] %s197
      %200 = dma.vmem_to_hbm [thread:$0]  %s196, 32, %s198, [#allocation3]
    $region17: #{attention_forward.1} parent=1 // pred_fallthru
      _
    // Predicated region
    $region18: #{attention_forward.1} parent=1 // pred_check
      _
    $region19: #{attention_forward.1} parent=1 // pred_check_branch
      %202 = sbr.rel (0) target = $region21
    $region20: #{attention_forward.1} parent=1 // pred_region
      %204 = dma.done [#allocation3], 32
    $region21: #{attention_forward.1} parent=1 // pred_fallthru
      _
    %205 = vsyncpa [#allocation3], 1

</llo_original>
